<compile_context>
chip_gen: v7x
topology: tpu7x:2x2x1
jax: 0.10.0
libtpu: 0.0.40
codegen_flags: <defaults>
</compile_context>

<pallas_src>
import functools

import jax
import jax.numpy as jnp
from jax import lax
from jax.experimental import pallas as pl
from jax.experimental.pallas import tpu as pltpu


def _round_up(x, m):
    return ((x + m - 1) // m) * m


# Contract the minor dim of both operands (A @ B^T), flash-attention style.
_NT_DIMS = (((1,), (1,)), ((), ()))


def _mlp_critic_kernel(obs_ref, w1t_ref, b1_ref, w2t_ref, b2_ref, w3_ref, b3_ref,
                       out_ref, *, act_dtype):
    """Fused 3-layer MLP critic on one (TB, obs_dim) batch tile.

    Transposed (batch-on-lanes) layout: intermediates are (features, TB).

    obs_ref : (TB, obs_dim) f32        w1t_ref: (H1, obs_dim) f32
    b1_ref  : (H1, 1) f32              w2t_ref: (H2, H1) bf16
    b2_ref  : (H2, 1) f32              w3_ref : (H2, 1) f32
    b3_ref  : (1, 1) f32               out_ref: (1, TB) f32   (lane-dense)
    """
    x = obs_ref[...]                                             # (TB, obs_dim) f32

    # Layer 1: (H1, TB) = W1^T @ obs^T via NT dot_general; f32 operands (the
    # contracted dim is tiny, so MXU speed is irrelevant and no transpose of
    # the obs tile is materialized in the kernel body).
    h1 = lax.dot_general(w1t_ref[...], x, _NT_DIMS,
                         preferred_element_type=jnp.float32)     # (H1, TB) f32
    h1 = jnp.tanh((h1 + b1_ref[...]).astype(act_dtype))

    # Layer 2: (H2, TB) = W2^T @ h1 -- plain NN matmul, bf16 MXU operands,
    # f32 accumulate, lanes = batch.
    h2 = jnp.dot(w2t_ref[...], h1.astype(jnp.bfloat16),
                 preferred_element_type=jnp.float32)             # (H2, TB) f32
    h2 = jnp.tanh((h2 + b2_ref[...]).astype(act_dtype))

    # Layer 3 (out_features == 1): fold as VPU multiply + sublane (XLU) sum
    # instead of a 1-row MXU matmul.  Result is already lane-dense (1, TB).
    v = jnp.sum(h2.astype(jnp.float32) * w3_ref[...], axis=0, keepdims=True)
    out_ref[...] = (v + b3_ref[...]).astype(out_ref.dtype)


def _default_block_b(batch):
    """Batch-tile heuristic: big tiles amortize the ~0.35 us per-grid-step
    overhead; multiples of 128 when multi-tile; >= 4 grid steps for large
    batches so v7x's two TensorCores can share the 'parallel' batch axis."""
    if batch <= 1024:
        return _round_up(batch, 8)                       # single tile
    return min(8192, _round_up(pl.cdiv(batch, 4), 128))


def _bf16_activations_supported():
    """bf16 VPU/EUP exists on v6e/v7x; v5e and older keep tanh/bias in f32."""
    try:
        kind = jax.devices()[0].device_kind.lower()
    except Exception:
        return False
    return ("v6" in kind) or ("v7" in kind)


def mlp_critic_forward(obs, params, *, block_b=None):
    """obs: (B, obs_dim) float32.  params: dict of W1,b1,W2,b2,W3,b3 (f32).
    Returns value estimates of shape (B,), matching torch.squeeze(net(obs), -1)."""
    B, obs_dim = obs.shape
    h1 = params["W1"].shape[1]
    h2 = params["W2"].shape[1]

    tb = _default_block_b(B) if block_b is None else block_b
    num_tiles = pl.cdiv(B, tb)
    if num_tiles > 1 and tb % 128 != 0:
        raise ValueError("block_b must be a multiple of 128 when B > block_b")
    bp = num_tiles * tb          # padded extent of the lane-dense output only

    # Weights: one-time tiny transposes/casts (no per-batch HBM passes).
    # Biases stay as f32 columns so they broadcast over the lane (batch) axis.
    w1t = params["W1"].T.astype(jnp.float32)             # (H1, obs_dim)
    w2t = params["W2"].T.astype(jnp.bfloat16)            # (H2, H1)
    b1c = params["b1"].reshape(h1, 1).astype(jnp.float32)
    b2c = params["b2"].reshape(h2, 1).astype(jnp.float32)
    w3c = params["W3"].reshape(h2, 1).astype(jnp.float32)
    b3c = params["b3"].reshape(1, 1).astype(jnp.float32)

    act_dtype = jnp.bfloat16 if _bf16_activations_supported() else jnp.float32

    const2 = lambda i: (0, 0)    # weights/biases: VMEM-resident across the grid

    cost = pl.CostEstimate(
        flops=2 * bp * (obs_dim * h1 + h1 * h2 + h2),
        transcendentals=bp * (h1 + h2),
        bytes_accessed=(obs.size * 4 + bp * 4
                        + w1t.size * 4 + w2t.size * 2
                        + (b1c.size + b2c.size + w3c.size + b3c.size) * 4),
    )

    # Per-step VMEM estimate (double-buffered obs/out tiles + intermediates).
    # Only override the scoped-VMEM default when a custom block_b needs it;
    # keep headroom under v7x's 64 MiB physical VMEM.
    est_vmem = (2 * tb * obs_dim * 4 + 2 * tb * 4
                + 6 * tb * max(h1, h2) * 4 + (2 << 20))
    vmem_limit = (int(min(2 * est_vmem, 56 * 1024 * 1024))
                  if est_vmem > 12 * 1024 * 1024 else None)

    kernel = functools.partial(_mlp_critic_kernel, act_dtype=act_dtype)

    out = pl.pallas_call(
        kernel,
        out_shape=jax.ShapeDtypeStruct((1, bp), jnp.float32),
        grid=(num_tiles,),
        in_specs=[
            pl.BlockSpec((tb, obs_dim), lambda i: (i, 0)),   # streamed f32 batch tiles
            pl.BlockSpec(w1t.shape, const2),
            pl.BlockSpec(b1c.shape, const2),
            pl.BlockSpec(w2t.shape, const2),
            pl.BlockSpec(b2c.shape, const2),
            pl.BlockSpec(w3c.shape, const2),
            pl.BlockSpec(b3c.shape, const2),
        ],
        out_specs=pl.BlockSpec((1, tb), lambda i: (0, i)),   # lane-dense output row
        compiler_params=pltpu.CompilerParams(
            dimension_semantics=("parallel",),               # lets v7x split the batch
            vmem_limit_bytes=vmem_limit),
        cost_estimate=cost,
    )(obs, w1t, b1c, w2t, b2c, w3c, b3c)

    # (1, Bp) -> (B,)  (replaces the torch squeeze; drops any ragged-tile tail)
    return out[0, :B]


def init_params(key, obs_dim, hidden_sizes):
    """Deterministic synthetic init matching the Linear shapes of funcs.mlp."""
    sizes = [obs_dim] + list(hidden_sizes) + [1]
    params = {}
    for i in range(len(sizes) - 1):
        key, wk, bk = jax.random.split(key, 3)
        fan_in = sizes[i]
        scale = 1.0 / jnp.sqrt(jnp.float32(fan_in))
        params[f"W{i+1}"] = (jax.random.uniform(
            wk, (sizes[i], sizes[i + 1]), jnp.float32, -1.0, 1.0) * scale)
        params[f"b{i+1}"] = (jax.random.uniform(
            bk, (1, sizes[i + 1]), jnp.float32, -1.0, 1.0) * scale)
    return params


def _reference(obs, params):
    h = jnp.tanh(obs @ params["W1"] + params["b1"])
    h = jnp.tanh(h @ params["W2"] + params["b2"])
    return jnp.squeeze(h @ params["W3"] + params["b3"], axis=-1)


if __name__ == "__main__":
    key = jax.random.PRNGKey(0)
    obs_dim, hidden_sizes = 16, (32, 32)

    pkey, k1, k2 = jax.random.split(key, 3)
    params = init_params(pkey, obs_dim, hidden_sizes)

    # Case 1: tiny batch -> single grid tile.
    obs_small = jax.random.normal(k1, (8, obs_dim), dtype=jnp.float32)
    v_small = jax.block_until_ready(mlp_critic_forward(obs_small, params))
    ref_small = _reference(obs_small, params)
    assert v_small.shape == (8,)
    # bf16 layer-2 operands (and bf16 tanh on v6e/v7x) => relaxed tolerance.
    assert jnp.allclose(v_small, ref_small, atol=2e-2, rtol=2e-2)

    # Case 2: multi-tile grid (3 tiles of 128) with a ragged final tile --
    # exercises the no-pad boundary-block path and VMEM-resident weights.
    obs_big = jax.random.normal(k2, (300, obs_dim), dtype=jnp.float32)
    v_big = jax.block_until_ready(mlp_critic_forward(obs_big, params, block_b=128))
    ref_big = _reference(obs_big, params)
    assert v_big.shape == (300,)
    assert jnp.allclose(v_big, ref_big, atol=2e-2, rtol=2e-2)

    print("KERNEL_OK")
</pallas_src>

<mosaic_0001>
module attributes {stable_mosaic.version = 11 : i64} {
  func.func @_mlp_critic_kernel(%arg0: i32, %arg1: memref<8x16xf32, #tpu.memory_space<vmem>>, %arg2: memref<32x16xf32, #tpu.memory_space<vmem>>, %arg3: memref<32x1xf32, #tpu.memory_space<vmem>>, %arg4: memref<32x32xbf16, #tpu.memory_space<vmem>>, %arg5: memref<32x1xf32, #tpu.memory_space<vmem>>, %arg6: memref<32x1xf32, #tpu.memory_space<vmem>>, %arg7: memref<1x1xf32, #tpu.memory_space<vmem>>, %arg8: memref<1x8xf32, #tpu.memory_space<vmem>>) attributes {dimension_semantics = [#tpu.dimension_semantics<parallel>], iteration_bounds = array<i64: 1>, scalar_prefetch = 0 : i64, scratch_operands = 0 : i64, tpu.core_type = #tpu.core_type<tc>, window_params = [{transform_indices = @transform_0, window_bounds = array<i64: 8, 16>}, {pipeline_mode = #tpu.pipeline_mode<synchronous>, transform_indices = @transform_1, window_bounds = array<i64: 32, 16>}, {pipeline_mode = #tpu.pipeline_mode<synchronous>, transform_indices = @transform_2, window_bounds = array<i64: 32, 1>}, {pipeline_mode = #tpu.pipeline_mode<synchronous>, transform_indices = @transform_3, window_bounds = array<i64: 32, 32>}, {pipeline_mode = #tpu.pipeline_mode<synchronous>, transform_indices = @transform_4, window_bounds = array<i64: 32, 1>}, {pipeline_mode = #tpu.pipeline_mode<synchronous>, transform_indices = @transform_5, window_bounds = array<i64: 32, 1>}, {pipeline_mode = #tpu.pipeline_mode<synchronous>, transform_indices = @transform_6, window_bounds = array<i64: 1, 1>}, {transform_indices = @transform_7, window_bounds = array<i64: 1, 8>}]} {
    %c0 = arith.constant 0 : index
    %c0_0 = arith.constant 0 : index
    %0 = vector.load %arg1[%c0, %c0_0] : memref<8x16xf32, #tpu.memory_space<vmem>>, vector<8x16xf32>
    %c0_1 = arith.constant 0 : index
    %c0_2 = arith.constant 0 : index
    %1 = vector.load %arg2[%c0_1, %c0_2] : memref<32x16xf32, #tpu.memory_space<vmem>>, vector<32x16xf32>
    %cst = arith.constant dense<0.000000e+00> : vector<32x8xf32>
    %2 = tpu.matmul %1, %0, %cst {dimension_numbers = #tpu.dot_dimension_numbers<[1], [1], [0], [0], [0, 0, 1, 0], [], []>} : vector<32x16xf32>, vector<8x16xf32>, vector<32x8xf32> -> vector<32x8xf32>
    %c0_3 = arith.constant 0 : index
    %c0_4 = arith.constant 0 : index
    %3 = vector.load %arg3[%c0_3, %c0_4] : memref<32x1xf32, #tpu.memory_space<vmem>>, vector<32x1xf32>
    %4 = vector.broadcast %3 : vector<32x1xf32> to vector<32x8xf32>
    %5 = arith.addf %2, %4 : vector<32x8xf32>
    %6 = math.tanh %5 : vector<32x8xf32>
    %c0_5 = arith.constant 0 : index
    %c0_6 = arith.constant 0 : index
    %7 = vector.load %arg4[%c0_5, %c0_6] : memref<32x32xbf16, #tpu.memory_space<vmem>>, vector<32x32xbf16>
    %8 = arith.truncf %6 : vector<32x8xf32> to vector<32x8xbf16>
    %cst_7 = arith.constant dense<0.000000e+00> : vector<32x8xf32>
    %9 = tpu.matmul %7, %8, %cst_7 {dimension_numbers = #tpu.dot_dimension_numbers<[1], [0], [0], [1], [0, 0, 1, 1], [], []>} : vector<32x32xbf16>, vector<32x8xbf16>, vector<32x8xf32> -> vector<32x8xf32>
    %c0_8 = arith.constant 0 : index
    %c0_9 = arith.constant 0 : index
    %10 = vector.load %arg5[%c0_8, %c0_9] : memref<32x1xf32, #tpu.memory_space<vmem>>, vector<32x1xf32>
    %11 = vector.broadcast %10 : vector<32x1xf32> to vector<32x8xf32>
    %12 = arith.addf %9, %11 : vector<32x8xf32>
    %13 = math.tanh %12 : vector<32x8xf32>
    %c0_10 = arith.constant 0 : index
    %c0_11 = arith.constant 0 : index
    %14 = vector.load %arg6[%c0_10, %c0_11] : memref<32x1xf32, #tpu.memory_space<vmem>>, vector<32x1xf32>
    %15 = vector.broadcast %14 : vector<32x1xf32> to vector<32x8xf32>
    %16 = arith.mulf %13, %15 : vector<32x8xf32>
    %cst_12 = arith.constant dense<0.000000e+00> : vector<8xf32>
    %17 = vector.multi_reduction <add>, %16, %cst_12 [0] : vector<32x8xf32> to vector<8xf32>
    %18 = vector.shape_cast %17 : vector<8xf32> to vector<1x8xf32>
    %c0_13 = arith.constant 0 : index
    %c0_14 = arith.constant 0 : index
    %19 = vector.load %arg7[%c0_13, %c0_14] : memref<1x1xf32, #tpu.memory_space<vmem>>, vector<1x1xf32>
    %20 = vector.broadcast %19 : vector<1x1xf32> to vector<1x8xf32>
    %21 = arith.addf %18, %20 : vector<1x8xf32>
    %c0_15 = arith.constant 0 : index
    %c0_16 = arith.constant 0 : index
    %22 = vector.load %arg8[%c0_15, %c0_16] : memref<1x8xf32, #tpu.memory_space<vmem>>, vector<1x8xf32>
    tpu.vector_store %arg8[%c0_15, %c0_16], %21 {strides = array<i32>} : memref<1x8xf32, #tpu.memory_space<vmem>>, vector<1x8xf32>,
    return
  }
  func.func @transform_0(%arg0: i32) -> (i32, i32) {
    %c0_i32 = arith.constant 0 : i32
    %c0_i32_0 = arith.constant 0 : i32
    return %arg0, %c0_i32 : i32, i32
  }
  func.func @transform_1(%arg0: i32) -> (i32, i32) {
    %c0_i32 = arith.constant 0 : i32
    %c0_i32_0 = arith.constant 0 : i32
    %c0_i32_1 = arith.constant 0 : i32
    return %c0_i32, %c0_i32_0 : i32, i32
  }
  func.func @transform_2(%arg0: i32) -> (i32, i32) {
    %c0_i32 = arith.constant 0 : i32
    %c0_i32_0 = arith.constant 0 : i32
    %c0_i32_1 = arith.constant 0 : i32
    return %c0_i32, %c0_i32_0 : i32, i32
  }
  func.func @transform_3(%arg0: i32) -> (i32, i32) {
    %c0_i32 = arith.constant 0 : i32
    %c0_i32_0 = arith.constant 0 : i32
    %c0_i32_1 = arith.constant 0 : i32
    return %c0_i32, %c0_i32_0 : i32, i32
  }
  func.func @transform_4(%arg0: i32) -> (i32, i32) {
    %c0_i32 = arith.constant 0 : i32
    %c0_i32_0 = arith.constant 0 : i32
    %c0_i32_1 = arith.constant 0 : i32
    return %c0_i32, %c0_i32_0 : i32, i32
  }
  func.func @transform_5(%arg0: i32) -> (i32, i32) {
    %c0_i32 = arith.constant 0 : i32
    %c0_i32_0 = arith.constant 0 : i32
    %c0_i32_1 = arith.constant 0 : i32
    return %c0_i32, %c0_i32_0 : i32, i32
  }
  func.func @transform_6(%arg0: i32) -> (i32, i32) {
    %c0_i32 = arith.constant 0 : i32
    %c0_i32_0 = arith.constant 0 : i32
    %c0_i32_1 = arith.constant 0 : i32
    return %c0_i32, %c0_i32_0 : i32, i32
  }
  func.func @transform_7(%arg0: i32) -> (i32, i32) {
    %c0_i32 = arith.constant 0 : i32
    %c0_i32_0 = arith.constant 0 : i32
    return %c0_i32, %arg0 : i32, i32
  }
}

</mosaic_0001>

<llo_original>
// kernel: tpu_custom_call.1
$region0: #{tpu_custom_call.1}
  #allocation0 [shape = 'u32[]', space=smem, size = 0x4, offset = 0x4, fixed_abs, tag = 'smem constant byte address 0x4 - core index']
  #allocation1 [shape = 'u32[144,128]{1,0:T(1,128)}', space=vmem, size = 0x12000, scoped, tag = 'internal scratch']
  #allocation2 [shape = 'f32[1,1]{1,0:T(1,128)S(1)}', space=vmem, size = 0x200, scoped, tag = 'scoped memory for tpu_custom_call.1']
  %s0 = inlined_call_operand.vmem [shape: f32[8,16], index: 0, kind: input, shape index: {}]
  %s1 = inlined_call_operand.vmem [shape: f32[32,16], index: 1, kind: input, shape index: {}]
  %s2 = inlined_call_operand.vmem [shape: f32[32,1], index: 2, kind: input, shape index: {}]
  %s3 = inlined_call_operand.vmem [shape: bf16[32,32], index: 3, kind: input, shape index: {}]
  %s4 = inlined_call_operand.vmem [shape: f32[32,1], index: 4, kind: input, shape index: {}]
  %s5 = inlined_call_operand.vmem [shape: f32[32,1], index: 5, kind: input, shape index: {}]
  %s6 = inlined_call_operand.<no memory space> [shape: f32[1,1], index: 6, kind: input, shape index: {}]
  %s7 = inlined_call_operand.hbm [shape: f32[1,8], index: 7, kind: output, shape index: {}]
  %s8 = sld [smem:[#allocation0]]
  $region38: #{tpu_custom_call.1} parent=0
    _
  %s10 = ssub.s32 1, %s8
  %s11 = scalar_select 0, %s10, %s8
  %v12 = vstv %s6
  %13 = vst [vmem:[#allocation2] sm:$0x1] %v12
  $region1: #{tpu_custom_call.1} parent=0
    #allocation3 [shape = 'u8[512]{0}', space=vmem, size = 0x400, scoped, tag = 'output window, operand 0, single buffered']
    #allocation4 [shape = 's32[1]{0}', space=sflag, size = 0x4, scoped, tag = 'scoped memory for tpu_custom_call.1']
    %14 = vsyncpa [#allocation4], 0
    // Predicated region
    $region2: #{tpu_custom_call.1} parent=1 // pred_check
      _
    $region3: #{tpu_custom_call.1} parent=1 // pred_check_branch
      %16 = sbr.rel (0) target = $region5
    $region4: #{tpu_custom_call.1} parent=1 // pred_region
      _
    $region5: #{tpu_custom_call.1} parent=1 // pred_fallthru
      _
    // Predicated region
    $region6: #{tpu_custom_call.1} parent=1 // pred_check
      _
    $region7: #{tpu_custom_call.1} parent=1 // pred_check_branch
      %18 = sbr.rel (0) target = $region9
    $region8: #{tpu_custom_call.1} parent=1 // pred_region
      _
    $region9: #{tpu_custom_call.1} parent=1 // pred_fallthru
      _
    // Predicated region
    $region10: #{tpu_custom_call.1} parent=1 // pred_check
      _
    $region11: #{tpu_custom_call.1} parent=1 // pred_check_branch
      %20 = sbr.rel (0) target = $region13
    $region12: #{tpu_custom_call.1} parent=1 // pred_region
      _
    $region13: #{tpu_custom_call.1} parent=1 // pred_fallthru
      _
    // Predicated region
    $region14: #{tpu_custom_call.1} parent=1 // pred_check
      _
    $region15: #{tpu_custom_call.1} parent=1 // pred_check_branch
      %22 = sbr.rel (0) target = $region17
    $region16: #{tpu_custom_call.1} parent=1 // pred_region
      _
    $region17: #{tpu_custom_call.1} parent=1 // pred_fallthru
      _
    // Predicated region
    $region18: #{tpu_custom_call.1} parent=1 // pred_check
      _
    $region19: #{tpu_custom_call.1} parent=1 // pred_check_branch
      %24 = sbr.rel (0) target = $region21
    $region20: #{tpu_custom_call.1} parent=1 // pred_region
      _
    $region21: #{tpu_custom_call.1} parent=1 // pred_fallthru
      _
    // Predicated region
    $region22: #{tpu_custom_call.1} parent=1 // pred_check
      _
    $region23: #{tpu_custom_call.1} parent=1 // pred_check_branch
      %26 = sbr.rel (0) target = $region25
    $region24: #{tpu_custom_call.1} parent=1 // pred_region
      _
    $region25: #{tpu_custom_call.1} parent=1 // pred_fallthru
      _
    // Predicated region
    $region26: #{tpu_custom_call.1} parent=1 // pred_check
      _
    $region27: #{tpu_custom_call.1} parent=1 // pred_check_branch
      %28 = sbr.rel (0) target = $region29
    $region28: #{tpu_custom_call.1} parent=1 // pred_region
      _
    $region29: #{tpu_custom_call.1} parent=1 // pred_fallthru
      _
    %v30 = vld [vmem:[%s0] sm:$0xff]
    %v31 = vld [vmem:[%s1] sm:$0xff]
    %v32 = vld [vmem:[%s1 + $0x8] sm:$0xff]
    %v33 = vld [vmem:[%s1 + $0x10] sm:$0xff]
    %v34 = vld [vmem:[%s1 + $0x18] sm:$0xff]
    %v35 = vld [vmem:[%s2] sm:$0xff]
    %v36 = vld [vmem:[%s2 + $0x8] sm:$0xff]
    %v37 = vld [vmem:[%s2 + $0x10] sm:$0xff]
    %v38 = vld [vmem:[%s2 + $0x18] sm:$0xff]
    %40 = vset.pattern.permute.xlu0 0
    %41 = vperm.xlu0 %40, %v35
    %v42 = vpop.permute.xlu0 %41
    %45 = vset.pattern.permute.xlu0 0
    %46 = vperm.xlu0 %45, %v36
    %v47 = vpop.permute.xlu0 %46
    %50 = vset.pattern.permute.xlu0 0
    %51 = vperm.xlu0 %50, %v37
    %v52 = vpop.permute.xlu0 %51
    %55 = vset.pattern.permute.xlu0 0
    %56 = vperm.xlu0 %55, %v38
    %v57 = vpop.permute.xlu0 %56
    %vm59 = vcmask 130048
    %v61 = vsel %vm59, %v31, 0
    %v64 = vsel %vm59, %v32, 0
    %v67 = vsel %vm59, %v33, 0
    %v70 = vsel %vm59, %v34, 0
    %v73 = vsel %vm59, %v30, 0
    %75 = vmatprep.subr.mxu0 0.0
    %76 = vmatpush1.xpose.msra.mxu0 %v73
    %77 = vmatprep.subr.mxu0 0.0
    %78 = vmatpush1.xpose.msra.mxu0 0.0
    %79 = vmatprep.subr.mxu0 0.0
    %80 = vmatpush1.xpose.msra.mxu0 0.0
    %81 = vmatprep.subr.mxu0 0.0
    %82 = vmatpush1.xpose.msra.mxu0 0.0
    %83 = vmatprep.subr.mxu0 0.0
    %84 = vmatpush1.xpose.msra.mxu0 0.0
    %85 = vmatprep.subr.mxu0 0.0
    %86 = vmatpush1.xpose.msra.mxu0 0.0
    %87 = vmatprep.subr.mxu0 0.0
    %88 = vmatpush1.xpose.msra.mxu0 0.0
    %89 = vmatprep.subr.mxu0 0.0
    %90 = vmatpush1.xpose.msra.mxu0 0.0
    %91 = vmatprep.subr.mxu0 0.0
    %92 = vmatpush1.xpose.msra.mxu0 0.0
    %93 = vmatprep.subr.mxu0 0.0
    %94 = vmatpush1.xpose.msra.mxu0 0.0
    %95 = vmatprep.subr.mxu0 0.0
    %96 = vmatpush1.xpose.msra.mxu0 0.0
    %97 = vmatprep.subr.mxu0 0.0
    %98 = vmatpush1.xpose.msra.mxu0 0.0
    %99 = vmatprep.subr.mxu0 0.0
    %100 = vmatpush1.xpose.msra.mxu0 0.0
    %101 = vmatprep.subr.mxu0 0.0
    %102 = vmatpush1.xpose.msra.mxu0 0.0
    %103 = vmatprep.subr.mxu0 0.0
    %104 = vmatpush1.xpose.msra.mxu0 0.0
    %105 = vmatprep.subr.mxu0 0.0
    %106 = vmatpush1.xpose.msra.mxu0 0.0
    %107 = vmatprep.subr.mxu0 0.0
    %108 = vmatpush1.xpose.msra.mxu0 0.0
    %109 = vmatprep.subr.mxu0 0.0
    %110 = vmatpush1.xpose.msra.mxu0 0.0
    %111 = vmatprep.subr.mxu0 0.0
    %112 = vmatpush1.xpose.msra.mxu0 0.0
    %113 = vmatprep.subr.mxu0 0.0
    %114 = vmatpush1.xpose.msra.mxu0 0.0
    %115 = vmatprep.subr.mxu0 0.0
    %116 = vmatpush1.xpose.msra.mxu0 0.0
    %117 = vmatprep.subr.mxu0 0.0
    %118 = vmatpush1.xpose.msra.mxu0 0.0
    %119 = vmatprep.subr.mxu0 0.0
    %120 = vmatpush1.xpose.msra.mxu0 0.0
    %121 = vmatprep.subr.mxu0 0.0
    %122 = vmatpush1.xpose.msra.mxu0 0.0
    %123 = vmatprep.subr.mxu0 0.0
    %124 = vmatpush1.xpose.msra.mxu0 0.0
    %125 = vmatprep.subr.mxu0 0.0
    %126 = vmatpush1.xpose.msra.mxu0 0.0
    %127 = vmatprep.subr.mxu0 0.0
    %128 = vmatpush1.xpose.msra.mxu0 0.0
    %129 = vmatprep.subr.mxu0 0.0
    %130 = vmatpush1.xpose.msra.mxu0 0.0
    %131 = vmatprep.subr.mxu0 0.0
    %132 = vmatpush1.xpose.msra.mxu0 0.0
    %133 = vmatprep.subr.mxu0 0.0
    %134 = vmatpush1.xpose.msra.mxu0 0.0
    %135 = vmatprep.subr.mxu0 0.0
    %136 = vmatpush1.xpose.msra.mxu0 0.0
    %137 = vmatprep.subr.mxu0 0.0
    %138 = vmatpush1.xpose.msra.mxu0 0.0
    %139 = vmatprep.mubr.f32.mxu0 0.0
    %140 = vmatmul.mubr.f32.gmra.mrb[0].mxu0 %v61
    %v141 = vpop.f32.mrb[0].mxu0
    %v142 = vadd.f32 %v42, %v141
    %v143 = vpop.f32.mrb[0].mxu0
    %144 = vmatprep.mubr.f32.mxu0 0.0
    %145 = vmatmul.mubr.f32.gmra.mrb[0].mxu0 %v64
    %v146 = vpop.f32.mrb[0].mxu0
    %v147 = vadd.f32 %v47, %v146
    %v148 = vpop.f32.mrb[0].mxu0
    %149 = vmatprep.mubr.f32.mxu0 0.0
    %150 = vmatmul.mubr.f32.gmra.mrb[0].mxu0 %v67
    %v151 = vpop.f32.mrb[0].mxu0
    %v152 = vadd.f32 %v52, %v151
    %v153 = vpop.f32.mrb[0].mxu0
    %154 = vmatprep.mubr.f32.mxu0 0.0
    %155 = vmatmul.mubr.f32.gmra.mrb[0].mxu0 %v70
    %v156 = vpop.f32.mrb[0].mxu0
    %v157 = vadd.f32 %v57, %v156
    %v158 = vpop.f32.mrb[0].mxu0
    %159 = vdwg.mxu0
    %v160 = vtanh.pop %v142
    %v161 = vtanh.pop %v147
    %v162 = vtanh.pop %v152
    %v163 = vtanh.pop %v157
    %v164 = vld [vmem:[%s3] sm:$0xf]
    %v165 = vld [vmem:[%s3 + $0x4] sm:$0xf]
    %v166 = vld [vmem:[%s3 + $0x8] sm:$0xf]
    %v167 = vld [vmem:[%s3 + $0xc] sm:$0xf]
    %v168 = vpack.c.bf16 %v161, %v160
    %v169 = vpack.c.bf16 %v163, %v162
    %v170 = vld [vmem:[%s4] sm:$0xff]
    %v171 = vld [vmem:[%s4 + $0x8] sm:$0xff]
    %v172 = vld [vmem:[%s4 + $0x10] sm:$0xff]
    %v173 = vld [vmem:[%s4 + $0x18] sm:$0xff]
    %175 = vset.pattern.permute.xlu0 0
    %176 = vperm.xlu0 %175, %v170
    %v177 = vpop.permute.xlu0 %176
    %180 = vset.pattern.permute.xlu0 0
    %181 = vperm.xlu0 %180, %v171
    %v182 = vpop.permute.xlu0 %181
    %185 = vset.pattern.permute.xlu0 0
    %186 = vperm.xlu0 %185, %v172
    %v187 = vpop.permute.xlu0 %186
    %190 = vset.pattern.permute.xlu0 0
    %191 = vperm.xlu0 %190, %v173
    %v192 = vpop.permute.xlu0 %191
    %v198 = vunpack.c.l.b16 %v164
    %v199 = vunpack.c.l.b16 %v165
    %v200 = vunpack.c.l.b16 %v166
    %v201 = vunpack.c.l.b16 %v167
    %v202 = vpack.c.b16 %v199, %v198
    %v203 = vpack.c.b16 %v201, %v200
    %vm204 = vcmask 261120
    %v206 = vsel %vm204, %v202, 0
    %v209 = vsel %vm204, %v203, 0
    %211 = vmatprep.subr.bf16.mxu0 0
    %212 = vmatpush1.bf16.msra.mxu0 %v168
    %213 = vmatprep.subr.bf16.mxu0 0
    %214 = vmatpush1.bf16.msra.mxu0 %v169
    %215 = vmatprep.subr.bf16.mxu0 0
    %216 = vmatpush1.bf16.msra.mxu0 0
    %217 = vmatprep.subr.bf16.mxu0 0
    %218 = vmatpush1.bf16.msra.mxu0 0
    %219 = vmatprep.subr.bf16.mxu0 0
    %220 = vmatpush1.bf16.msra.mxu0 0
    %221 = vmatprep.subr.bf16.mxu0 0
    %222 = vmatpush1.bf16.msra.mxu0 0
    %223 = vmatprep.subr.bf16.mxu0 0
    %224 = vmatpush1.bf16.msra.mxu0 0
    %225 = vmatprep.subr.bf16.mxu0 0
    %226 = vmatpush1.bf16.msra.mxu0 0
    %227 = vmatprep.subr.bf16.mxu0 0
    %228 = vmatpush1.bf16.msra.mxu0 0
    %229 = vmatprep.subr.bf16.mxu0 0
    %230 = vmatpush1.bf16.msra.mxu0 0
    %231 = vmatprep.subr.bf16.mxu0 0
    %232 = vmatpush1.bf16.msra.mxu0 0
    %233 = vmatprep.subr.bf16.mxu0 0
    %234 = vmatpush1.bf16.msra.mxu0 0
    %235 = vmatprep.subr.bf16.mxu0 0
    %236 = vmatpush1.bf16.msra.mxu0 0
    %237 = vmatprep.subr.bf16.mxu0 0
    %238 = vmatpush1.bf16.msra.mxu0 0
    %239 = vmatprep.subr.bf16.mxu0 0
    %240 = vmatpush1.bf16.msra.mxu0 0
    %241 = vmatprep.subr.bf16.mxu0 0
    %242 = vmatpush1.bf16.msra.mxu0 0
    %243 = vmatprep.mubr.bf16.mxu0 0
    %244 = vmatmul.mubr.bf16.gmra.mrb[0].mxu0 %v206
    %v245 = vpop.f32.mrb[0].mxu0
    %v246 = vadd.f32 %v177, %v245
    %v247 = vpop.f32.mrb[0].mxu0
    %v248 = vpop.f32.mrb[0].mxu0
    %v249 = vadd.f32 %v182, %v248
    %v250 = vpop.f32.mrb[0].mxu0
    %251 = vmatprep.mubr.bf16.mxu0 0
    %252 = vmatmul.mubr.bf16.gmra.mrb[0].mxu0 %v209
    %v253 = vpop.f32.mrb[0].mxu0
    %v254 = vadd.f32 %v187, %v253
    %v255 = vpop.f32.mrb[0].mxu0
    %v256 = vpop.f32.mrb[0].mxu0
    %v257 = vadd.f32 %v192, %v256
    %v258 = vpop.f32.mrb[0].mxu0
    %259 = vdwg.mxu0
    %v260 = vtanh.pop %v246
    %v261 = vtanh.pop %v249
    %v262 = vtanh.pop %v254
    %v263 = vtanh.pop %v257
    %v264 = vld [vmem:[%s5] sm:$0xff]
    %v265 = vld [vmem:[%s5 + $0x8] sm:$0xff]
    %v266 = vld [vmem:[%s5 + $0x10] sm:$0xff]
    %v267 = vld [vmem:[%s5 + $0x18] sm:$0xff]
    %269 = vset.pattern.permute.xlu0 0
    %270 = vperm.xlu0 %269, %v264
    %v271 = vpop.permute.xlu0 %270
    %274 = vset.pattern.permute.xlu0 0
    %275 = vperm.xlu0 %274, %v265
    %v276 = vpop.permute.xlu0 %275
    %279 = vset.pattern.permute.xlu0 0
    %280 = vperm.xlu0 %279, %v266
    %v281 = vpop.permute.xlu0 %280
    %284 = vset.pattern.permute.xlu0 0
    %285 = vperm.xlu0 %284, %v267
    %v286 = vpop.permute.xlu0 %285
    %v288 = vmul.f32 %v260, %v271
    %v289 = vmul.f32 %v261, %v276
    %v290 = vmul.f32 %v262, %v281
    %v291 = vmul.f32 %v263, %v286
    %vm292 = vcmask 64512
    %v293 = vsel %vm292, %v288, 0.0
    %v294 = vsel %vm292, %v289, 0.0
    %v295 = vadd.f32 %v293, %v294
    %v296 = vsel %vm292, %v290, 0.0
    %v297 = vadd.f32 %v295, %v296
    %v298 = vsel %vm292, %v291, 0.0
    %v299 = vadd.f32 %v297, %v298
    %v300 = vrot.slane %v299, 4
    %v301 = vadd.f32 %v299, %v300
    %v302 = vrot.slane %v301, 2
    %v303 = vadd.f32 %v301, %v302
    %v304 = vrot.slane %v303, 1
    %v305 = vadd.f32 %v303, %v304
    %v306 = vld [vmem:[#allocation2] sm:$0x1]
    %308 = vset.pattern.permute.xlu0 0
    %309 = vperm.xlu0 %308, %v306
    %v310 = vpop.permute.xlu0 %309
    %v312 = vlaneseq
    %v313 = vshrl.u32 %v312, 7
    %v314 = vsub.s32 0, %v313
    %v315 = vrot.slane %v310, %v314
    %v316 = vadd.f32 %v305, %v315
    %vm317 = vcmask 57344
    %318 = vst.msk [vmem:[#allocation3] sm:$0x1] %vm317, %v316
    // Predicated region
    $region30: #{tpu_custom_call.1} parent=1 // pred_check
      _
    $region31: #{tpu_custom_call.1} parent=1 // pred_check_branch
      %320 = sbr.rel (0) target = $region33
    $region32: #{tpu_custom_call.1} parent=1 // pred_region
      %s322 = ssub.s32 16, 16
      %323 = vsyncadd [#allocation4], %s322
      %s325 = sshll.u32 [#allocation3], 4
      %s326 = int_to_ptr.vmem [resolvable:$true] %s325
      %328 = dma.vmem_to_hbm [thread:$0]  %s326, 16, %s7, [#allocation4]
    $region33: #{tpu_custom_call.1} parent=1 // pred_fallthru
      _
    // Predicated region
    $region34: #{tpu_custom_call.1} parent=1 // pred_check
      _
    $region35: #{tpu_custom_call.1} parent=1 // pred_check_branch
      %330 = sbr.rel (0) target = $region37
    $region36: #{tpu_custom_call.1} parent=1 // pred_region
      %331 = dma.done [#allocation4], 16
    $region37: #{tpu_custom_call.1} parent=1 // pred_fallthru
      _
    %332 = vsyncpa [#allocation4], 1

</llo_original>
